<compile_context>
chip_gen: v7x
topology: tpu7x:2x2x1
jax: 0.10.0
libtpu: 0.0.40
codegen_flags: <defaults>
</compile_context>

<pallas_src>
import functools
import math

import jax
import jax.numpy as jnp
from jax import lax
from jax.experimental import pallas as pl
from jax.experimental.pallas import tpu as pltpu


# ------------------------------ helpers ------------------------------------
def _round_up(x, m):
    return ((x + m - 1) // m) * m


def _vmem_budget_bytes():
    """Generation-aware scoped-VMEM budget.

    v5e/v6e physical VMEM = 128 MiB (scoped defaults 16/32 MiB),
    v7x physical VMEM = 64 MiB per TensorCore.
    """
    try:
        cap = int(pltpu.get_tpu_info().vmem_capacity_bytes)
    except Exception:
        cap = 64 << 20  # most conservative (v7x per-TC)
    return max(32 << 20, min(int(cap * 0.6), 64 << 20))


def _pad_indices(idx, b_pad):
    b = idx.shape[0]
    if b_pad == b:
        return idx
    return jnp.concatenate([idx, jnp.zeros((b_pad - b,), jnp.int32)])


# ------------------------------ kernels ------------------------------------
def _resident_gather_kernel(idx_ref, table_ref, out_ref, *, apply_relu):
    """VMEM-resident-table gather.

    idx_ref:   (TB, 1)   int32 row indices for this tile.
    table_ref: (V, ROW)  full table, resident in VMEM (constant index_map).
    out_ref:   (TB, ROW) dense output tile.

    Gather is a one-hot matmul: uses the otherwise-idle MXU, needs no dynamic
    sublane indexing and no per-row masked stores, and is numerically exact
    (each output row sums exactly one table row).
    """
    tb = out_ref.shape[0]
    v = table_ref.shape[0]
    idx = idx_ref[...]                                            # (TB, 1)
    iota = lax.broadcasted_iota(jnp.int32, (tb, v), 1)            # (TB, V)
    onehot = (idx == iota).astype(table_ref.dtype)                # (TB, V)
    res = jnp.dot(onehot, table_ref[...],
                  preferred_element_type=jnp.float32)             # (TB, ROW)
    if apply_relu:
        res = jnp.maximum(res, 0.0)
    out_ref[...] = res.astype(out_ref.dtype)


def _stream_gather_kernel(idx_ref, table_hbm, out_ref, buf, sem, *,
                          tb, apply_relu):
    """HBM-streaming gather (table never enters VMEM wholesale).

    idx_ref:   SMEM (B_pad,) int32  (scalar-prefetched row indices)
    table_hbm: HBM  (V, ROW)        (memory_space=pl.ANY)
    out_ref:   VMEM (TB, ROW)       dense output tile
    buf:       VMEM (2, TB, ROW)    double-buffered gather scratch
    sem:       DMA  (2,)            one semaphore per buffer slot

    Per grid step: burst-start TB row DMAs for the *next* tile, wait on this
    tile's TB DMAs, relu, one dense tile store.  Requires sequential grid
    execution -> grid axis is marked "arbitrary".
    """
    j = pl.program_id(0)
    nt = pl.num_programs(0)
    slot = j % 2

    def row_copy(tile, slot_, r):
        row_idx = idx_ref[tile * tb + r]
        return pltpu.make_async_copy(
            table_hbm.at[pl.ds(row_idx, 1), :],
            buf.at[slot_, pl.ds(r, 1), :],
            sem.at[slot_],
        )

    # Prime: start tile 0 into slot 0.
    @pl.when(j == 0)
    def _():
        @pl.loop(0, tb)
        def _(r):
            row_copy(0, 0, r).start()

    # Prefetch next tile's rows into the other slot (overlaps this tile's
    # wait/compute and the pipelined output writeback).
    @pl.when(j + 1 < nt)
    def _():
        @pl.loop(0, tb)
        def _(r):
            row_copy(j + 1, 1 - slot, r).start()

    # Wait for all TB rows of this tile.
    @pl.loop(0, tb)
    def _(r):
        row_copy(j, slot, r).wait()

    x = buf[slot]                                                 # (TB, ROW)
    if apply_relu:
        x = jnp.maximum(x, 0.0)
    out_ref[...] = x.astype(out_ref.dtype)


# ------------------------------ wrapper -------------------------------------
def cat_embedder_forward(indices, tables, *, nonlin="relu", emb_dropout=0.0,
                         tb=None, gather_mode="auto"):
    """CatEmbedder.forward.

    tables: (V, n_emb, D) stacked per-type embeddings in sorted type order
            (or pre-flattened (V, n_emb*D)).
    indices: a compile-time Python int (single lookup, mirrors the torch
             forward(entrez) call) or an int array (B,) of row indices.

    Returns (n_emb*D,) for a Python int, else (B, n_emb*D); row-major
    flattening of (n_emb, D) == torch.cat over sorted emb_names.
    """
    if tables.ndim == 3:
        V, n_emb, D = tables.shape
        row = n_emb * D
        table2d = tables.reshape(V, row)   # free: row-major (V,n_emb,D)==(V,n_emb*D)
    else:
        V, row = tables.shape
        table2d = tables

    apply_relu = (nonlin == "relu")
    # TODO(synk): training-mode dropout (emb_dropout > 0) not implemented;
    # nn.Dropout is identity in eval mode, which is what we reproduce here.
    del emb_dropout

    # Fast path: compile-time-constant index -> static gather, no kernel.
    if isinstance(indices, int):
        out = table2d[indices]
        if apply_relu:
            out = jnp.maximum(out, 0.0)
        return out

    idx = jnp.asarray(indices, dtype=jnp.int32).reshape(-1)
    # TPU DMA/VMEM reads are not bounds-checked at runtime; clamp defensively.
    # (The torch path would instead raise on a bad entrez key.)
    idx = jnp.clip(idx, 0, V - 1)
    B = idx.shape[0]

    dtype_bytes = jnp.dtype(table2d.dtype).itemsize
    table_bytes = V * row * dtype_bytes
    vmem_limit = _vmem_budget_bytes()

    if gather_mode == "auto":
        # Resident only when (double-buffered) table + tiles + the (TB, V)
        # one-hot intermediate are comfortably small on every generation
        # (incl. v7x with 64 MiB physical VMEM per TensorCore).
        gather_mode = "resident" if table_bytes <= (2 << 20) else "stream"
    if gather_mode not in ("resident", "stream"):
        raise ValueError(f"unknown gather_mode: {gather_mode}")

    tb_cap = 64 if gather_mode == "resident" else 128
    tb_ = tb if tb is not None else min(tb_cap, _round_up(B, 8))
    tb_ = max(8, _round_up(tb_, 8))            # multiple of 8 -> dense sublanes
    b_pad = _round_up(B, tb_)
    nt = b_pad // tb_
    idx_p = _pad_indices(idx, b_pad)

    if gather_mode == "resident":
        kernel = functools.partial(_resident_gather_kernel,
                                   apply_relu=apply_relu)
        out = pl.pallas_call(
            kernel,
            out_shape=jax.ShapeDtypeStruct((b_pad, row), table2d.dtype),
            grid_spec=pltpu.PrefetchScalarGridSpec(
                num_scalar_prefetch=0,
                grid=(nt,),
                in_specs=[
                    pl.BlockSpec((tb_, 1), lambda j: (j, 0)),    # row indices
                    pl.BlockSpec((V, row), lambda j: (0, 0)),    # resident table
                ],
                out_specs=pl.BlockSpec((tb_, row), lambda j: (j, 0)),
            ),
            compiler_params=pltpu.CompilerParams(
                dimension_semantics=("parallel",),               # megacore on v7x
                vmem_limit_bytes=vmem_limit,
            ),
            cost_estimate=pl.CostEstimate(
                flops=2 * b_pad * V * row,
                transcendentals=0,
                bytes_accessed=table_bytes + b_pad * 4 + b_pad * row * dtype_bytes,
            ),
        )(idx_p.reshape(b_pad, 1), table2d)
    else:
        kernel = functools.partial(_stream_gather_kernel,
                                   tb=tb_, apply_relu=apply_relu)
        out = pl.pallas_call(
            kernel,
            out_shape=jax.ShapeDtypeStruct((b_pad, row), table2d.dtype),
            grid_spec=pltpu.PrefetchScalarGridSpec(
                num_scalar_prefetch=1,                           # idx -> SMEM
                grid=(nt,),
                in_specs=[pl.BlockSpec(memory_space=pl.ANY)],    # table stays in HBM
                out_specs=pl.BlockSpec((tb_, row), lambda j, idx_ref: (j, 0)),
                scratch_shapes=[
                    pltpu.VMEM((2, tb_, row), table2d.dtype),
                    pltpu.SemaphoreType.DMA((2,)),
                ],
            ),
            compiler_params=pltpu.CompilerParams(
                # Manual cross-step DMA pipeline assumes sequential grid.
                dimension_semantics=("arbitrary",),
                vmem_limit_bytes=vmem_limit,
            ),
            cost_estimate=pl.CostEstimate(
                flops=b_pad * row,
                transcendentals=0,
                bytes_accessed=2 * b_pad * row * dtype_bytes + b_pad * 4,
            ),
        )(idx_p, table2d)

    return out[:B]


# ------------------------------ init ----------------------------------------
def init_embedding_tables(key, n_emb, entrez_size, embed_sz, dtype=jnp.float32):
    """Deterministic stand-in for SingleEmbedder init: uniform(-b, b), b=sqrt(3/D).

    Returns (entrez_size, n_emb, embed_sz); axis 1 is the sorted type order so
    the n_emb rows of one entrez index are contiguous (one row per lookup).
    """
    # TODO(synk): pretrained-embedding file loading + mean-normalization
    # (SingleEmbedder.load_embedding / normalize_embeddings) is file I/O at
    # init time and is not reproduced here.
    bound = math.sqrt(3.0 / embed_sz)
    keys = jax.random.split(key, n_emb)
    per_type = [
        jax.random.uniform(k, (entrez_size, embed_sz),
                           minval=-bound, maxval=bound, dtype=jnp.float32)
        for k in keys
    ]
    return jnp.stack(per_type, axis=1).astype(dtype)   # (V, n_emb, D)


# ------------------------------ demo / test ----------------------------------
if __name__ == "__main__":
    entrez_size = 32                               # args.entrez_size
    embed_sz = 128                                 # args.original_embed_sz
    emb_names = sorted(["go", "ppi", "seq"])       # args.embedding_type_list
    n_emb = len(emb_names)
    nonlin = "relu"                                # args.nonlin
    emb_dropout = 0.0                              # args.emb_dropout (eval)

    key = jax.random.PRNGKey(0)
    tables = init_embedding_tables(key, n_emb, entrez_size, embed_sz)

    # entrez_to_idx lookup is a host-side python dict op.
    entrez_to_idx = {f"entrez_{i}": i for i in range(entrez_size)}
    batch_entrez = ["entrez_7", "entrez_0", "entrez_31", "entrez_3",
                    "entrez_12", "entrez_25", "entrez_7", "entrez_19"]
    indices = jnp.asarray([entrez_to_idx[e] for e in batch_entrez],
                          dtype=jnp.int32)                             # (8,)

    def reference(idx_arr):
        r = tables.reshape(entrez_size, n_emb * embed_sz)[idx_arr]
        return jnp.maximum(r, 0.0) if nonlin == "relu" else r

    # 1) VMEM-resident one-hot-gather path (small table), single tile.
    out_res = cat_embedder_forward(indices, tables, nonlin=nonlin,
                                   emb_dropout=emb_dropout,
                                   gather_mode="resident")
    out_res = jax.block_until_ready(out_res)
    assert out_res.shape == (len(batch_entrez), n_emb * embed_sz)
    assert jnp.allclose(out_res, reference(indices), atol=1e-6), \
        "mismatch vs reference (resident path)"

    # 2) HBM-streaming manual-DMA path with a multi-step grid (B=32, TB=8 ->
    #    4 grid steps; exercises the double-buffered cross-step prefetch).
    big_idx = jax.random.randint(jax.random.PRNGKey(1), (32,), 0, entrez_size,
                                 dtype=jnp.int32)
    out_str = cat_embedder_forward(big_idx, tables, nonlin=nonlin,
                                   emb_dropout=emb_dropout,
                                   gather_mode="stream", tb=8)
    out_str = jax.block_until_ready(out_str)
    assert out_str.shape == (32, n_emb * embed_sz)
    assert jnp.allclose(out_str, reference(big_idx), atol=1e-6), \
        "mismatch vs reference (streaming path)"

    # 3) Auto dispatch (small table -> resident), multi-tile grid.
    out_auto = cat_embedder_forward(big_idx, tables, nonlin=nonlin,
                                    emb_dropout=emb_dropout, tb=8)
    out_auto = jax.block_until_ready(out_auto)
    assert jnp.allclose(out_auto, reference(big_idx), atol=1e-6), \
        "mismatch vs reference (auto path)"

    # 4) Compile-time-constant single index (matches torch forward(entrez)).
    single = cat_embedder_forward(entrez_to_idx["entrez_7"], tables,
                                  nonlin=nonlin, emb_dropout=emb_dropout)
    single = jax.block_until_ready(single)
    assert single.shape == (n_emb * embed_sz,)
    assert jnp.allclose(single, reference(indices)[0], atol=1e-6), \
        "mismatch vs reference (single static index)"

    print("KERNEL_OK")
</pallas_src>

<mosaic_0001>
module attributes {stable_mosaic.version = 11 : i64} {
  func.func @_resident_gather_kernel(%arg0: i32, %arg1: memref<8x1xi32, #tpu.memory_space<vmem>>, %arg2: memref<32x384xf32, #tpu.memory_space<vmem>>, %arg3: memref<8x384xf32, #tpu.memory_space<vmem>>) attributes {dimension_semantics = [#tpu.dimension_semantics<parallel>], iteration_bounds = array<i64: 1>, scalar_prefetch = 0 : i64, scratch_operands = 0 : i64, tpu.core_type = #tpu.core_type<tc>, window_params = [{transform_indices = @transform_0, window_bounds = array<i64: 8, 1>}, {pipeline_mode = #tpu.pipeline_mode<synchronous>, transform_indices = @transform_1, window_bounds = array<i64: 32, 384>}, {transform_indices = @transform_2, window_bounds = array<i64: 8, 384>}]} {
    %c0 = arith.constant 0 : index
    %c0_0 = arith.constant 0 : index
    %0 = vector.load %arg1[%c0, %c0_0] : memref<8x1xi32, #tpu.memory_space<vmem>>, vector<8x1xi32>
    %1 = tpu.iota {dimensions = array<i32: 1>} : vector<8x32xi32>
    %2 = vector.broadcast %0 : vector<8x1xi32> to vector<8x32xi32>
    %3 = arith.cmpi eq, %2, %1 : vector<8x32xi32>
    %4 = arith.extui %3 : vector<8x32xi1> to vector<8x32xi32>
    %5 = arith.sitofp %4 : vector<8x32xi32> to vector<8x32xf32>
    %c0_1 = arith.constant 0 : index
    %c0_2 = arith.constant 0 : index
    %6 = vector.load %arg2[%c0_1, %c0_2] : memref<32x384xf32, #tpu.memory_space<vmem>>, vector<32x384xf32>
    %cst = arith.constant dense<0.000000e+00> : vector<8x384xf32>
    %7 = tpu.matmul %5, %6, %cst {dimension_numbers = #tpu.dot_dimension_numbers<[1], [0], [0], [1], [0, 0, 1, 1], [], []>} : vector<8x32xf32>, vector<32x384xf32>, vector<8x384xf32> -> vector<8x384xf32>
    %cst_3 = arith.constant 0.000000e+00 : f32
    %8 = vector.broadcast %cst_3 : f32 to vector<8x384xf32>
    %9 = arith.maximumf %7, %8 : vector<8x384xf32>
    %c0_4 = arith.constant 0 : index
    %c0_5 = arith.constant 0 : index
    %10 = vector.load %arg3[%c0_4, %c0_5] : memref<8x384xf32, #tpu.memory_space<vmem>>, vector<8x384xf32>
    tpu.vector_store %arg3[%c0_4, %c0_5], %9 {strides = array<i32>} : memref<8x384xf32, #tpu.memory_space<vmem>>, vector<8x384xf32>,
    return
  }
  func.func @transform_0(%arg0: i32) -> (i32, i32) {
    %c0_i32 = arith.constant 0 : i32
    %c0_i32_0 = arith.constant 0 : i32
    return %arg0, %c0_i32 : i32, i32
  }
  func.func @transform_1(%arg0: i32) -> (i32, i32) {
    %c0_i32 = arith.constant 0 : i32
    %c0_i32_0 = arith.constant 0 : i32
    %c0_i32_1 = arith.constant 0 : i32
    return %c0_i32, %c0_i32_0 : i32, i32
  }
  func.func @transform_2(%arg0: i32) -> (i32, i32) {
    %c0_i32 = arith.constant 0 : i32
    %c0_i32_0 = arith.constant 0 : i32
    return %arg0, %c0_i32 : i32, i32
  }
}

</mosaic_0001>

<llo_original>
// kernel: tpu_custom_call.1
$region0: #{tpu_custom_call.1}
  #allocation0 [shape = 'u32[]', space=smem, size = 0x4, offset = 0x4, fixed_abs, tag = 'smem constant byte address 0x4 - core index']
  #allocation1 [shape = 'u32[144,128]{1,0:T(1,128)}', space=vmem, size = 0x12000, scoped, tag = 'internal scratch']
  %s0 = inlined_call_operand.vmem [shape: s32[8,1], index: 0, kind: input, shape index: {}]
  %s1 = inlined_call_operand.hbm [shape: f32[32,384], index: 1, kind: input, shape index: {}]
  %s2 = inlined_call_operand.hbm [shape: f32[8,384], index: 2, kind: output, shape index: {}]
  %s3 = sld [smem:[#allocation0]]
  $region22: #{tpu_custom_call.1} parent=0
    _
  %s5 = ssub.s32 1, %s3
  %s6 = scalar_select 0, %s5, %s3
  $region1: #{tpu_custom_call.1} parent=0
    #allocation2 [shape = 'u8[49152]{0}', space=vmem, size = 0xc000, scoped, tag = 'input window, operand 1, single buffered']
    #allocation3 [shape = 's32[1]{0}', space=sflag, size = 0x4, scoped, tag = 'scoped memory for tpu_custom_call.1']
    #allocation4 [shape = 's32[1]{0}', space=sflag, size = 0x4, scoped, tag = 'scoped memory for tpu_custom_call.1']
    #allocation5 [shape = 'u8[12288]{0}', space=vmem, size = 0x3000, scoped, tag = 'output window, operand 0, single buffered']
    %7 = vsyncpa [#allocation3], 0
    %8 = vsyncpa [#allocation4], 0
    // Predicated region
    $region2: #{tpu_custom_call.1} parent=1 // pred_check
      _
    $region3: #{tpu_custom_call.1} parent=1 // pred_check_branch
      %10 = sbr.rel (0) target = $region5
    $region4: #{tpu_custom_call.1} parent=1 // pred_region
      _
    $region5: #{tpu_custom_call.1} parent=1 // pred_fallthru
      _
    // Predicated region
    $region6: #{tpu_custom_call.1} parent=1 // pred_check
      _
    $region7: #{tpu_custom_call.1} parent=1 // pred_check_branch
      %12 = sbr.rel (0) target = $region9
    $region8: #{tpu_custom_call.1} parent=1 // pred_region
      %s14 = ssub.s32 1536, 1536
      %15 = vsyncadd [#allocation3], %s14
      %s16 = sshll.u32 [#allocation2], 4
      %s17 = int_to_ptr.vmem [resolvable:$true] %s16
      %22 = dma.hbm_to_vmem [thread:$0]  %s1, 1536, %s17, [#allocation3], 384, 384, 24
    $region9: #{tpu_custom_call.1} parent=1 // pred_fallthru
      _
    // Predicated region
    $region10: #{tpu_custom_call.1} parent=1 // pred_check
      _
    $region11: #{tpu_custom_call.1} parent=1 // pred_check_branch
      %24 = sbr.rel (0) target = $region13
    $region12: #{tpu_custom_call.1} parent=1 // pred_region
      %25 = dma.done [#allocation3], 1536
    $region13: #{tpu_custom_call.1} parent=1 // pred_fallthru
      _
    %v26 = vld [vmem:[%s0] sm:$0xff]
    %v27 = vlaneseq
    %v28 = vand.u32 %v27, 127
    %29 = vset.pattern.permute.xlu0 0
    %30 = vperm.xlu0 %29, %v26
    %v31 = vpop.permute.xlu0 %30
    %vm32 = vcmp.eq.s32.totalorder %v31, %v28
    %v33 = vsel %vm32, 1, 0
    %v34 = vcvt.s32.f32 %v33
    %v35 = vld [vmem:[#allocation2] sm:$0xff]
    %v36 = vld [vmem:[#allocation2 + $0x8] sm:$0xff]
    %v37 = vld [vmem:[#allocation2 + $0x10] sm:$0xff]
    %v38 = vld [vmem:[#allocation2 + $0x18] sm:$0xff]
    %v39 = vld [vmem:[#allocation2 + $0x20] sm:$0xff]
    %v40 = vld [vmem:[#allocation2 + $0x28] sm:$0xff]
    %v41 = vld [vmem:[#allocation2 + $0x30] sm:$0xff]
    %v42 = vld [vmem:[#allocation2 + $0x38] sm:$0xff]
    %v43 = vld [vmem:[#allocation2 + $0x40] sm:$0xff]
    %v44 = vld [vmem:[#allocation2 + $0x48] sm:$0xff]
    %v45 = vld [vmem:[#allocation2 + $0x50] sm:$0xff]
    %v46 = vld [vmem:[#allocation2 + $0x58] sm:$0xff]
    %vm47 = vcmask 261120
    %v49 = vsel %vm47, %v34, 0
    %51 = vmatprep.subr.mxu0 %v36
    %52 = vmatpush1.msra.mxu0 %v35
    %53 = vmatprep.subr.mxu0 %v39
    %54 = vmatpush1.msra.mxu0 %v38
    %55 = vmatprep.subr.mxu0 %v42
    %56 = vmatpush1.msra.mxu0 %v41
    %57 = vmatprep.subr.mxu0 %v45
    %58 = vmatpush1.msra.mxu0 %v44
    %59 = vmatprep.subr.mxu0 0.0
    %60 = vmatpush1.msra.mxu0 0.0
    %61 = vmatprep.subr.mxu0 0.0
    %62 = vmatpush1.msra.mxu0 0.0
    %63 = vmatprep.subr.mxu0 0.0
    %64 = vmatpush1.msra.mxu0 0.0
    %65 = vmatprep.subr.mxu0 0.0
    %66 = vmatpush1.msra.mxu0 0.0
    %67 = vmatprep.subr.mxu0 0.0
    %68 = vmatpush1.msra.mxu0 0.0
    %69 = vmatprep.subr.mxu0 0.0
    %70 = vmatpush1.msra.mxu0 0.0
    %71 = vmatprep.subr.mxu0 0.0
    %72 = vmatpush1.msra.mxu0 0.0
    %73 = vmatprep.subr.mxu0 0.0
    %74 = vmatpush1.msra.mxu0 0.0
    %75 = vmatprep.subr.mxu0 0.0
    %76 = vmatpush1.msra.mxu0 0.0
    %77 = vmatprep.subr.mxu0 0.0
    %78 = vmatpush1.msra.mxu0 0.0
    %79 = vmatprep.subr.mxu0 0.0
    %80 = vmatpush1.msra.mxu0 0.0
    %81 = vmatprep.subr.mxu0 0.0
    %82 = vmatpush1.msra.mxu0 0.0
    %83 = vmatprep.subr.mxu0 0.0
    %84 = vmatpush1.msra.mxu0 0.0
    %85 = vmatprep.subr.mxu0 0.0
    %86 = vmatpush1.msra.mxu0 0.0
    %87 = vmatprep.subr.mxu0 0.0
    %88 = vmatpush1.msra.mxu0 0.0
    %89 = vmatprep.subr.mxu0 0.0
    %90 = vmatpush1.msra.mxu0 0.0
    %91 = vmatprep.subr.mxu0 0.0
    %92 = vmatpush1.msra.mxu0 0.0
    %93 = vmatprep.subr.mxu0 0.0
    %94 = vmatpush1.msra.mxu0 0.0
    %95 = vmatprep.subr.mxu0 0.0
    %96 = vmatpush1.msra.mxu0 0.0
    %97 = vmatprep.subr.mxu0 0.0
    %98 = vmatpush1.msra.mxu0 0.0
    %99 = vmatprep.subr.mxu0 0.0
    %100 = vmatpush1.msra.mxu0 0.0
    %101 = vmatprep.subr.mxu0 0.0
    %102 = vmatpush1.msra.mxu0 0.0
    %103 = vmatprep.subr.mxu0 0.0
    %104 = vmatpush1.msra.mxu0 0.0
    %105 = vmatprep.subr.mxu0 0.0
    %106 = vmatpush1.msra.mxu0 0.0
    %107 = vmatprep.subr.mxu0 0.0
    %108 = vmatpush1.msra.mxu0 0.0
    %109 = vmatprep.subr.mxu0 0.0
    %110 = vmatpush1.msra.mxu0 0.0
    %111 = vmatprep.subr.mxu0 0.0
    %112 = vmatpush1.msra.mxu0 0.0
    %113 = vmatprep.subr.mxu0 0.0
    %114 = vmatpush1.msra.mxu0 0.0
    %115 = vmatprep.mubr.f32.mxu0 0.0
    %116 = vmatmul.mubr.f32.gmra.mrb[0].mxu0 %v49
    %v117 = vpop.f32.mrb[0].mxu0
    %v118 = vadd.f32 0.0, %v117
    %v119 = vpop.f32.mrb[0].mxu0
    %v120 = vadd.f32 0.0, %v119
    %121 = vdwg.mxu0
    %122 = vmatprep.subr.mxu0 0.0
    %123 = vmatpush1.msra.mxu0 %v37
    %124 = vmatprep.subr.mxu0 0.0
    %125 = vmatpush1.msra.mxu0 %v40
    %126 = vmatprep.subr.mxu0 0.0
    %127 = vmatpush1.msra.mxu0 %v43
    %128 = vmatprep.subr.mxu0 0.0
    %129 = vmatpush1.msra.mxu0 %v46
    %130 = vmatprep.subr.mxu0 0.0
    %131 = vmatpush1.msra.mxu0 0.0
    %132 = vmatprep.subr.mxu0 0.0
    %133 = vmatpush1.msra.mxu0 0.0
    %134 = vmatprep.subr.mxu0 0.0
    %135 = vmatpush1.msra.mxu0 0.0
    %136 = vmatprep.subr.mxu0 0.0
    %137 = vmatpush1.msra.mxu0 0.0
    %138 = vmatprep.subr.mxu0 0.0
    %139 = vmatpush1.msra.mxu0 0.0
    %140 = vmatprep.subr.mxu0 0.0
    %141 = vmatpush1.msra.mxu0 0.0
    %142 = vmatprep.subr.mxu0 0.0
    %143 = vmatpush1.msra.mxu0 0.0
    %144 = vmatprep.subr.mxu0 0.0
    %145 = vmatpush1.msra.mxu0 0.0
    %146 = vmatprep.subr.mxu0 0.0
    %147 = vmatpush1.msra.mxu0 0.0
    %148 = vmatprep.subr.mxu0 0.0
    %149 = vmatpush1.msra.mxu0 0.0
    %150 = vmatprep.subr.mxu0 0.0
    %151 = vmatpush1.msra.mxu0 0.0
    %152 = vmatprep.subr.mxu0 0.0
    %153 = vmatpush1.msra.mxu0 0.0
    %154 = vmatprep.subr.mxu0 0.0
    %155 = vmatpush1.msra.mxu0 0.0
    %156 = vmatprep.subr.mxu0 0.0
    %157 = vmatpush1.msra.mxu0 0.0
    %158 = vmatprep.subr.mxu0 0.0
    %159 = vmatpush1.msra.mxu0 0.0
    %160 = vmatprep.subr.mxu0 0.0
    %161 = vmatpush1.msra.mxu0 0.0
    %162 = vmatprep.subr.mxu0 0.0
    %163 = vmatpush1.msra.mxu0 0.0
    %164 = vmatprep.subr.mxu0 0.0
    %165 = vmatpush1.msra.mxu0 0.0
    %166 = vmatprep.subr.mxu0 0.0
    %167 = vmatpush1.msra.mxu0 0.0
    %168 = vmatprep.subr.mxu0 0.0
    %169 = vmatpush1.msra.mxu0 0.0
    %170 = vmatprep.subr.mxu0 0.0
    %171 = vmatpush1.msra.mxu0 0.0
    %172 = vmatprep.subr.mxu0 0.0
    %173 = vmatpush1.msra.mxu0 0.0
    %174 = vmatprep.subr.mxu0 0.0
    %175 = vmatpush1.msra.mxu0 0.0
    %176 = vmatprep.subr.mxu0 0.0
    %177 = vmatpush1.msra.mxu0 0.0
    %178 = vmatprep.subr.mxu0 0.0
    %179 = vmatpush1.msra.mxu0 0.0
    %180 = vmatprep.subr.mxu0 0.0
    %181 = vmatpush1.msra.mxu0 0.0
    %182 = vmatprep.subr.mxu0 0.0
    %183 = vmatpush1.msra.mxu0 0.0
    %184 = vmatprep.subr.mxu0 0.0
    %185 = vmatpush1.msra.mxu0 0.0
    %186 = vmatprep.mubr.f32.mxu0 0.0
    %187 = vmatmul.mubr.f32.gmra.mrb[0].mxu0 %v49
    %v188 = vpop.f32.mrb[0].mxu0
    %v189 = vadd.f32 0.0, %v188
    %v190 = vpop.f32.mrb[0].mxu0
    %191 = vdwg.mxu0
    %v192 = vmax.f32 %v118, 0.0
    %v193 = vmax.f32 %v120, 0.0
    %v194 = vmax.f32 %v189, 0.0
    %195 = vst [vmem:[#allocation5] sm:$0xff] %v192
    %196 = vst [vmem:[#allocation5 + $0x8] sm:$0xff] %v193
    %197 = vst [vmem:[#allocation5 + $0x10] sm:$0xff] %v194
    // Predicated region
    $region14: #{tpu_custom_call.1} parent=1 // pred_check
      _
    $region15: #{tpu_custom_call.1} parent=1 // pred_check_branch
      %199 = sbr.rel (0) target = $region17
    $region16: #{tpu_custom_call.1} parent=1 // pred_region
      %s201 = ssub.s32 384, 384
      %202 = vsyncadd [#allocation4], %s201
      %s204 = sshll.u32 [#allocation5], 4
      %s205 = int_to_ptr.vmem [resolvable:$true] %s204
      %207 = dma.vmem_to_hbm [thread:$0]  %s205, 384, %s2, [#allocation4]
    $region17: #{tpu_custom_call.1} parent=1 // pred_fallthru
      _
    // Predicated region
    $region18: #{tpu_custom_call.1} parent=1 // pred_check
      _
    $region19: #{tpu_custom_call.1} parent=1 // pred_check_branch
      %209 = sbr.rel (0) target = $region21
    $region20: #{tpu_custom_call.1} parent=1 // pred_region
      %210 = dma.done [#allocation4], 384
    $region21: #{tpu_custom_call.1} parent=1 // pred_fallthru
      _
    %211 = vsyncpa [#allocation3], 1
    %212 = vsyncpa [#allocation4], 1

</llo_original>
